<compile_context>
chip_gen: v7x
topology: tpu7x:2x2x1
jax: 0.10.0
libtpu: 0.0.40
codegen_flags: <defaults>
</compile_context>

<pallas_src>
import numpy as np
import jax
import jax.numpy as jnp
from jax.experimental import pallas as pl
from jax.experimental.pallas import tpu as pltpu


# ----------------------------------------------------------------------------
# Mask generation (faithful port of the PyTorch module's numpy helpers).
# Deterministic here because numpy is seeded before calling it.
# ----------------------------------------------------------------------------
def generate_masks_(m: int, n: int, s: float) -> np.ndarray:
    total_positions = int(m * s)
    masks = []
    for _ in range(n):
        new_vector = np.zeros([total_positions])
        idx = np.random.choice(range(total_positions), m, replace=False)
        new_vector[idx] = 1
        masks.append(new_vector)
    masks = np.array(masks)
    masks = masks[:, ~np.all(masks == 0, axis=0)]
    return masks


def generate_masks(m: int, n: int, s: float, max_tries: int = 10000) -> np.ndarray:
    masks = generate_masks_(m, n, s)
    expected_size = int(m * s * (1 - (1 - 1 / s) ** n))
    tries = 0
    while masks.shape[1] != expected_size:
        masks = generate_masks_(m, n, s)
        tries += 1
        if tries > max_tries:  # retry cap to avoid an unbounded loop
            raise ValueError("generate_masks failed to reach expected size")
    return masks


def generation_wrapper(c: int, n: int, scale: float) -> np.ndarray:
    if c < 10:
        raise ValueError("channels must be >= 10 for Masksembles")
    if scale > 6.0:
        raise ValueError("scale must be <= 6.0")
    active_features = int(int(c) / (scale * (1 - (1 - 1 / scale) ** n)))
    masks = generate_masks(active_features, n, scale)
    s = scale
    for s in np.linspace(max(0.8 * scale, 1.0), 1.5 * scale, 300):
        if masks.shape[-1] >= c:
            break
        masks = generate_masks(active_features, n, s)
    new_upper_scale = s
    if masks.shape[-1] != c:
        for s in np.linspace(max(0.8 * scale, 1.0), new_upper_scale, 1000):
            if masks.shape[-1] >= c:
                break
            masks = generate_masks(active_features, n, s)
    if masks.shape[-1] != c:
        raise ValueError("mask generation failed; try a different scale")
    return masks


# ----------------------------------------------------------------------------
# Pallas kernel: per-row masked scaling, broadcast over the lane (HW) dim.
# ----------------------------------------------------------------------------
def _masksembles_kernel(x_ref, s_ref, o_ref):
    # x_ref: (ROWS, LANES), s_ref: (ROWS, 1) -> broadcast multiply over lanes.
    o_ref[...] = x_ref[...].astype(jnp.float32) * s_ref[...]


_SUBLANE = 8
_LANE = 128
# Per-(input + f32 output) block budget. Double-buffered this is ~12 MiB, which
# fits under the smallest scoped-VMEM default across generations
# (v5e: 16 MiB, v6e: 32 MiB, v7x: 32 MiB of 64 MiB physical) with headroom.
_BLOCK_PAIR_BUDGET = 6 * 1024 * 1024


def _round_up(x: int, m: int) -> int:
    return ((x + m - 1) // m) * m


def _choose_blocks(rows: int, lanes: int, in_itemsize: int):
    """Pick (row_block, lane_block) for a (rows, lanes) streaming multiply.

    row_block is a multiple of 8 (sublanes), lane_block a multiple of 128
    (lane-dense stores). The in+out bytes of one block stay under
    _BLOCK_PAIR_BUDGET so the double-buffered working set fits scoped VMEM on
    every TPU generation.
    """
    pair = in_itemsize + 4  # input element + f32 output element
    lanes128 = _round_up(lanes, _LANE)
    rows8 = _round_up(rows, _SUBLANE)

    max_rows_full = _BLOCK_PAIR_BUDGET // (lanes128 * pair)
    if max_rows_full >= _SUBLANE:
        # Full lane width fits: stream big row slabs.
        lane_block = lanes128
        row_block = min((max_rows_full // _SUBLANE) * _SUBLANE, rows8)
        # Prefer >= 2 row blocks so v7x can balance the leading parallel axis
        # across both TensorCores (no effect on single-core v5e/v6e).
        if row_block >= rows8 and rows8 >= 2 * _SUBLANE:
            row_block = _round_up(pl.cdiv(rows8, 2), _SUBLANE)
    else:
        # Even one 8-row slab at full lane width exceeds the budget
        # (huge feature maps): split the lane dimension instead.
        row_block = _SUBLANE
        lane_block = (_BLOCK_PAIR_BUDGET // (_SUBLANE * pair)) // 512 * 512
        lane_block = max(lane_block, _LANE)
        lane_block = min(lane_block, lanes128)
    return row_block, lane_block


def masksembles2d_forward(x_nchw: jax.Array, masks: jax.Array, n: int) -> jax.Array:
    """Training-mode Masksembles2D forward.

    x_nchw: (N, C, H, W); masks: (n, C) float. Returns float32 (N, C, H, W).
    """
    N, C, H, W = x_nchw.shape
    if N % n != 0:
        raise ValueError(
            "Batch size must be divisible by n, got batch {} and n {}".format(N, n)
        )
    per_group = N // n
    HW = H * W
    R = N * C

    # Per-row (sample, channel) scale so a block can never straddle a mask
    # group with the wrong mask. Tiny gather, done once in the wrapper.
    group_idx = jnp.repeat(jnp.arange(n, dtype=jnp.int32), per_group)      # (N,)
    row_scale = masks.astype(jnp.float32)[group_idx].reshape(R, 1)         # (N*C, 1)

    x_rows = x_nchw.reshape(R, HW)
    in_itemsize = jnp.dtype(x_rows.dtype).itemsize

    row_block, lane_block = _choose_blocks(R, HW, in_itemsize)
    R_pad = _round_up(R, row_block)
    HW_pad = _round_up(HW, lane_block)

    # Zero-pad to block multiples: keeps stores lane-dense (multiple of 128)
    # and index maps exact. Padded rows have scale 0, so padded output is 0.
    if R_pad != R or HW_pad != HW:
        x_rows = jnp.pad(x_rows, ((0, R_pad - R), (0, HW_pad - HW)))
    if R_pad != R:
        row_scale = jnp.pad(row_scale, ((0, R_pad - R), (0, 0)))

    grid = (R_pad // row_block, HW_pad // lane_block)

    # Advisory cost estimate: one multiply per element; full read + f32 write.
    cost = pl.CostEstimate(
        flops=R_pad * HW_pad,
        transcendentals=0,
        bytes_accessed=R_pad * HW_pad * (in_itemsize + 4) + R_pad * 4,
    )

    out_rows = pl.pallas_call(
        _masksembles_kernel,
        out_shape=jax.ShapeDtypeStruct((R_pad, HW_pad), jnp.float32),
        grid_spec=pltpu.PrefetchScalarGridSpec(
            num_scalar_prefetch=0,
            grid=grid,
            in_specs=[
                pl.BlockSpec((row_block, lane_block), lambda i, j: (i, j)),
                pl.BlockSpec((row_block, 1), lambda i, j: (i, 0)),
            ],
            out_specs=pl.BlockSpec((row_block, lane_block), lambda i, j: (i, j)),
        ),
        compiler_params=pltpu.CompilerParams(
            dimension_semantics=("parallel", "parallel"),
        ),
        cost_estimate=cost,
    )(x_rows, row_scale)

    if R_pad != R or HW_pad != HW:
        out_rows = out_rows[:R, :HW]
    return out_rows.reshape(N, C, H, W)


if __name__ == "__main__":
    # Small shapes consistent with the module: channels >= 10, batch % n == 0.
    N, C, H, W = 8, 16, 16, 16
    n_masks, scale = 4, 2.0

    # Deterministic "parameter" initialization (masks) in-script.
    # TODO(synk): the stochastic numpy rejection-sampling mask generation has no
    # Pallas equivalent and stays on host, exactly as in the module's __init__.
    np.random.seed(0)
    masks_np = generation_wrapper(C, n_masks, scale).astype(np.float32)  # (n, C)
    masks = jnp.asarray(masks_np)

    key = jax.random.PRNGKey(0)
    x = jax.random.normal(key, (N, C, H, W), dtype=jnp.float32)

    out = masksembles2d_forward(x, masks, n_masks)
    out = jax.block_until_ready(out)

    # Pure-numpy reference of the PyTorch forward (training mode).
    group_idx = np.repeat(np.arange(n_masks), N // n_masks)  # sample -> mask id
    ref = np.asarray(x) * masks_np[group_idx][:, :, None, None]
    np.testing.assert_allclose(np.asarray(out), ref, rtol=1e-6, atol=1e-6)

    assert out.shape == (N, C, H, W) and out.dtype == jnp.float32
    print("KERNEL_OK")
</pallas_src>

<mosaic_0001>
module attributes {stable_mosaic.version = 11 : i64} {
  func.func @_masksembles_kernel(%arg0: i32, %arg1: i32, %arg2: memref<64x256xf32, #tpu.memory_space<vmem>>, %arg3: memref<64x1xf32, #tpu.memory_space<vmem>>, %arg4: memref<64x256xf32, #tpu.memory_space<vmem>>) attributes {dimension_semantics = [#tpu.dimension_semantics<parallel>, #tpu.dimension_semantics<parallel>], iteration_bounds = array<i64: 2, 1>, scalar_prefetch = 0 : i64, scratch_operands = 0 : i64, tpu.core_type = #tpu.core_type<tc>, window_params = [{transform_indices = @transform_0, window_bounds = array<i64: 64, 256>}, {transform_indices = @transform_1, window_bounds = array<i64: 64, 1>}, {transform_indices = @transform_2, window_bounds = array<i64: 64, 256>}]} {
    %c0 = arith.constant 0 : index
    %c0_0 = arith.constant 0 : index
    %0 = vector.load %arg2[%c0, %c0_0] : memref<64x256xf32, #tpu.memory_space<vmem>>, vector<64x256xf32>
    %c0_1 = arith.constant 0 : index
    %c0_2 = arith.constant 0 : index
    %1 = vector.load %arg3[%c0_1, %c0_2] : memref<64x1xf32, #tpu.memory_space<vmem>>, vector<64x1xf32>
    %2 = vector.broadcast %1 : vector<64x1xf32> to vector<64x256xf32>
    %3 = arith.mulf %0, %2 : vector<64x256xf32>
    %c0_3 = arith.constant 0 : index
    %c0_4 = arith.constant 0 : index
    %4 = vector.load %arg4[%c0_3, %c0_4] : memref<64x256xf32, #tpu.memory_space<vmem>>, vector<64x256xf32>
    tpu.vector_store %arg4[%c0_3, %c0_4], %3 {strides = array<i32>} : memref<64x256xf32, #tpu.memory_space<vmem>>, vector<64x256xf32>,
    return
  }
  func.func @transform_0(%arg0: i32, %arg1: i32) -> (i32, i32) {
    %c0_i32 = arith.constant 0 : i32
    return %arg0, %arg1 : i32, i32
  }
  func.func @transform_1(%arg0: i32, %arg1: i32) -> (i32, i32) {
    %c0_i32 = arith.constant 0 : i32
    %c0_i32_0 = arith.constant 0 : i32
    return %arg0, %c0_i32 : i32, i32
  }
  func.func @transform_2(%arg0: i32, %arg1: i32) -> (i32, i32) {
    %c0_i32 = arith.constant 0 : i32
    return %arg0, %arg1 : i32, i32
  }
}

</mosaic_0001>

<llo_original>
// kernel: tpu_custom_call.1
$region0: #{tpu_custom_call.1}
  #allocation0 [shape = 'u32[]', space=smem, size = 0x4, offset = 0x4, fixed_abs, tag = 'smem constant byte address 0x4 - core index']
  #allocation1 [shape = 'u32[144,128]{1,0:T(1,128)}', space=vmem, size = 0x12000, scoped, tag = 'internal scratch']
  %s0 = inlined_call_operand.hbm [shape: f32[128,256], index: 0, kind: input, shape index: {}]
  %s1 = inlined_call_operand.vmem [shape: f32[128,1], index: 1, kind: input, shape index: {}]
  %s2 = inlined_call_operand.hbm [shape: f32[128,256], index: 2, kind: output, shape index: {}]
  %s3 = sld [smem:[#allocation0]]
  $region45: #{tpu_custom_call.1} parent=0
    _
  %s5 = ssub.s32 1, %s3
  %s6 = scalar_select 0, %s5, %s3
  $region1: #{tpu_custom_call.1} parent=0
    #allocation2 [shape = 'u8[131072]{0}', space=vmem, size = 0x20000, scoped, tag = 'input window, operand 0']
    #allocation3 [shape = 's32[2]{0}', space=sflag, size = 0x8, scoped, tag = 'scoped memory for tpu_custom_call.1']
    #allocation4 [shape = 's32[2]{0}', space=sflag, size = 0x8, scoped, tag = 'scoped memory for tpu_custom_call.1']
    #allocation5 [shape = 'u8[131072]{0}', space=vmem, size = 0x20000, scoped, tag = 'output window, operand 0']
    %7 = vsyncpa [#allocation3], 0
    %s8 = scalar_lea.sflag [#allocation3], 1
    %9 = vsyncpa %s8, 0
    %10 = vsyncpa [#allocation4], 0
    %s11 = scalar_lea.sflag [#allocation4], 1
    %12 = vsyncpa %s11, 0
    loop: start=0, step=1, limit=4
    $region2: #{tpu_custom_call.1} parent=1 // loop_pre_header
      _
    $region3: #{tpu_custom_call.1} parent=1 // loop_header
      %s14 = sphi 0, %s18
      %p15 = scmp.ge.s32.totalorder %s14, 4
      %s21 = sphi 0, %s33
      %s22 = sphi 0, %s29
      %s23 = sphi 0, %s21
      %s24 = sphi 0, %s22
      %s25 = sphi 0, %s23
      %s26 = sphi 0, %s24
      %s38 = sphi 0, %s40
      %s41 = sphi 0, %s38
      %s42 = sphi 0, %s41
      %s58 = sphi 0, %s42
      %s64 = sphi 0, %s66
      %s67 = sphi 0, %s64
      %s68 = sphi 0, %s67
      %s84 = sphi 0, %s68
      %s92 = sphi 0, %s94
      %s95 = sphi 0, %s92
      %s96 = sphi 0, %s95
      %s112 = sphi 0, %s96
    $region4: #{tpu_custom_call.1} parent=1 // loop_header_branch
      %17 = sbr.rel (%p15) target = $region8
    $region5: #{tpu_custom_call.1} parent=1 // loop_body
      %s19 = ssub.s32 %s14, 1
      %s20 = ssub.s32 %s14, 2
      %s27 = sadd.s32 1, %s22
      %p28 = scmp.ge.s32.totalorder %s27, 1
      %s29 = scalar_select %p28, 0, %s27
      %s30 = sadd.s32 1, %s21
      %s31 = scalar_select %p28, %s30, %s21
      %p32 = scmp.ge.s32.totalorder %s31, 2
      %s33 = scalar_select %p32, 0, %s31
      %s34 = ssub.s32 %s21, %s33
      %s35 = ssub.s32 %s22, %s29
      %s36 = sor.u32 %s34, %s35
      %p37 = scmp.eq.s32.totalorder %s36, 0
      %s39 = sadd.s32 %s38, 1
      %s40 = scalar_select %p37, %s38, %s39
      %p43 = pneg %p37
      %p44 = scmp.eq.s32.totalorder %s14, 1
      %p45 = por %p43, %p44
      %p46 = scmp.ne.s32.totalorder %s38, %s41
      %p47 = scmp.eq.s32.totalorder %s14, 0
      %p48 = por %p46, %p47
      %p49 = scmp.ne.s32.totalorder %s38, %s41
      %p50 = scmp.eq.s32.totalorder %s19, 1
      %p51 = por %p49, %p50
      %p52 = scmp.ne.s32.totalorder %s41, %s42
      %p53 = scmp.eq.s32.totalorder %s19, 0
      %p54 = por %p52, %p53
      %p55 = scmp.ne.s32.totalorder %s41, %s42
      %p56 = scmp.eq.s32.totalorder %s20, 1
      %p57 = por %p55, %p56
      %p59 = scmp.ne.s32.totalorder %s42, %s58
      %p60 = scmp.eq.s32.totalorder %s20, 0
      %p61 = por %p59, %p60
      %s62 = ssub.s32 %s21, %s33
      %p63 = scmp.eq.s32.totalorder %s62, 0
      %s65 = sadd.s32 %s64, 1
      %s66 = scalar_select %p63, %s64, %s65
      %p69 = pneg %p63
      %p70 = scmp.eq.s32.totalorder %s14, 1
      %p71 = por %p69, %p70
      %p72 = scmp.ne.s32.totalorder %s64, %s67
      %p73 = scmp.eq.s32.totalorder %s14, 0
      %p74 = por %p72, %p73
      %p75 = scmp.ne.s32.totalorder %s64, %s67
      %p76 = scmp.eq.s32.totalorder %s19, 1
      %p77 = por %p75, %p76
      %p78 = scmp.ne.s32.totalorder %s67, %s68
      %p79 = scmp.eq.s32.totalorder %s19, 0
      %p80 = por %p78, %p79
      %p81 = scmp.ne.s32.totalorder %s67, %s68
      %p82 = scmp.eq.s32.totalorder %s20, 1
      %p83 = por %p81, %p82
      %p85 = scmp.ne.s32.totalorder %s68, %s84
      %p86 = scmp.eq.s32.totalorder %s20, 0
      %p87 = por %p85, %p86
      %s88 = ssub.s32 %s21, %s33
      %s89 = ssub.s32 %s22, %s29
      %s90 = sor.u32 %s88, %s89
      %p91 = scmp.eq.s32.totalorder %s90, 0
      %s93 = sadd.s32 %s92, 1
      %s94 = scalar_select %p91, %s92, %s93
      %p97 = pneg %p91
      %p98 = scmp.eq.s32.totalorder %s14, 1
      %p99 = por %p97, %p98
      %p100 = scmp.ne.s32.totalorder %s92, %s95
      %p101 = scmp.eq.s32.totalorder %s14, 0
      %p102 = por %p100, %p101
      %p103 = scmp.ne.s32.totalorder %s92, %s95
      %p104 = scmp.eq.s32.totalorder %s19, 1
      %p105 = por %p103, %p104
      %p106 = scmp.ne.s32.totalorder %s95, %s96
      %p107 = scmp.eq.s32.totalorder %s19, 0
      %p108 = por %p106, %p107
      %p109 = scmp.ne.s32.totalorder %s95, %s96
      %p110 = scmp.eq.s32.totalorder %s20, 1
      %p111 = por %p109, %p110
      %p113 = scmp.ne.s32.totalorder %s96, %s112
      %p114 = scmp.eq.s32.totalorder %s20, 0
      %p115 = por %p113, %p114
      %p116 = scmp.le.s32.totalorder 1, %s14
      %p117 = scmp.lt.s32.totalorder %s14, 3
      %p118 = pnand %p116, %p117
      %p119 = pneg %p118
      // Predicated region
      $region9: #{tpu_custom_call.1} parent=5 // pred_check
        _
      $region10: #{tpu_custom_call.1} parent=5 // pred_check_branch
        %121 = sbr.rel (%p118) target = $region12
      $region11: #{tpu_custom_call.1} parent=5 // pred_region
        %s122 = ssub.s32 %s14, 1
      $region12: #{tpu_custom_call.1} parent=5 // pred_fallthru
        _
      %p123 = scmp.lt.s32.totalorder %s14, 2
      // Predicated region
      $region13: #{tpu_custom_call.1} parent=5 // pred_check
        %p124 = pneg %p123
      $region14: #{tpu_custom_call.1} parent=5 // pred_check_branch
        %126 = sbr.rel (%p124) target = $region16
      $region15: #{tpu_custom_call.1} parent=5 // pred_region
        // Predicated region
        $region17: #{tpu_custom_call.1} parent=15 // pred_check
          %p127 = pneg %p48
        $region18: #{tpu_custom_call.1} parent=15 // pred_check_branch
          %129 = sbr.rel (%p127) target = $region20
        $region19: #{tpu_custom_call.1} parent=15 // pred_region
          %s130 = sand.u32 %s38, 1
          %s131 = scalar_lea.sflag [#allocation3], %s130
          %s132 = sand.u32 %s38, 1
          %s133 = smul.addr %s132, 128
          %s134 = scalar_lea.vmem [#allocation2], %s133
          %s135 = smul.u32 8, %s21
          %s136 = smul.u32 2, %s22
          %s138 = ssub.s32 2048, 2048
          %139 = vsyncadd %s131, %s138
          %s140 = smul.addr %s135, 2
          %s141 = sadd.s32 %s136, %s140
          %s142 = smul.addr %s141, 128
          %s143 = scalar_lea.hbm %s0, %s142
          %s144 = sshll.u32 %s134, 4
          %s145 = int_to_ptr.vmem [resolvable:$true] %s144
          %150 = dma.hbm_to_vmem [thread:$0]  %s143, 2048, %s145, %s131, 256, 256, 16
        $region20: #{tpu_custom_call.1} parent=15 // pred_fallthru
          _
        // Predicated region
        $region21: #{tpu_custom_call.1} parent=15 // pred_check
          %p151 = pneg %p74
        $region22: #{tpu_custom_call.1} parent=15 // pred_check_branch
          %153 = sbr.rel (%p151) target = $region24
        $region23: #{tpu_custom_call.1} parent=15 // pred_region
          %s154 = smul.u32 8, %s21
          %p155 = scmp.lt.s32.totalorder %s154, 15
          %s156 = scalar_select %p155, %s154, 15
          %s157 = smul.addr %s156, 8
          %s158 = scalar_lea.vmem %s1, %s157
          %s159 = smul.u32 8, %s21
        $region24: #{tpu_custom_call.1} parent=15 // pred_fallthru
          _
      $region16: #{tpu_custom_call.1} parent=5 // pred_fallthru
        _
      %p160 = scmp.le.s32.totalorder 1, %s14
      %p161 = scmp.lt.s32.totalorder %s14, 3
      %p162 = pnand %p160, %p161
      %p163 = pneg %p162
      // Predicated region
      $region25: #{tpu_custom_call.1} parent=5 // pred_check
        _
      $region26: #{tpu_custom_call.1} parent=5 // pred_check_branch
        %165 = sbr.rel (%p162) target = $region28
      $region27: #{tpu_custom_call.1} parent=5 // pred_region
        %s166 = ssub.s32 %s14, 1
        %s167 = sand.u32 %s41, 1
        %s168 = scalar_lea.sflag [#allocation3], %s167
        %s169 = sand.u32 %s41, 1
        %s170 = smul.addr %s169, 128
        %s171 = scalar_lea.vmem [#allocation2], %s170
        // Predicated region
        $region29: #{tpu_custom_call.1} parent=27 // pred_check
          %p172 = pneg %p54
        $region30: #{tpu_custom_call.1} parent=27 // pred_check_branch
          %174 = sbr.rel (%p172) target = $region32
        $region31: #{tpu_custom_call.1} parent=27 // pred_region
          %175 = dma.done %s168, 2048
        $region32: #{tpu_custom_call.1} parent=27 // pred_fallthru
          _
        %s176 = sand.u32 %s41, 1
        %s177 = scalar_lea.sflag [#allocation3], %s176
        %s178 = sand.u32 %s41, 1
        %s179 = smul.addr %s178, 128
        %s180 = scalar_lea.vmem [#allocation2], %s179
        %p181 = pneg %p54
        %p182 = pneg %p51
        %s183 = smul.u32 8, %s23
        %p184 = scmp.lt.s32.totalorder %s183, 15
        %s185 = scalar_select %p184, %s183, 15
        %s186 = smul.addr %s185, 8
        %s187 = scalar_lea.vmem %s1, %s186
        %p188 = pneg %p80
        %p189 = pneg %p77
        %p190 = pneg %p108
        %p191 = pneg %p105
        %s192 = sand.u32 %s95, 1
        %s193 = scalar_lea.sflag [#allocation4], %s192
        %s194 = sand.u32 %s95, 1
        %s195 = smul.addr %s194, 128
        %s196 = scalar_lea.vmem [#allocation5], %s195
        %s197 = smul.u32 8, %s23
        %s198 = smul.u32 2, %s24
        %s199 = smul.u32 8, %s23
        %p200 = scmp.lt.s32.totalorder %s199, 15
        %s201 = scalar_select %p200, %s199, 15
        %s202 = smul.addr %s201, 8
        %s203 = scalar_lea.vmem %s1, %s202
        %s204 = smul.u32 8, %s23
        %s205 = smul.u32 8, %s23
        %s206 = smul.u32 2, %s24
        %v207 = vld [vmem:[%s171] sm:$0xff]
        %v208 = vld [vmem:[%s171 + $0x8] sm:$0xff]
        %v209 = vld [vmem:[%s171 + $0x10] sm:$0xff]
        %v210 = vld [vmem:[%s171 + $0x18] sm:$0xff]
        %v211 = vld [vmem:[%s171 + $0x20] sm:$0xff]
        %v212 = vld [vmem:[%s171 + $0x28] sm:$0xff]
        %v213 = vld [vmem:[%s171 + $0x30] sm:$0xff]
        %v214 = vld [vmem:[%s171 + $0x38] sm:$0xff]
        %v215 = vld [vmem:[%s171 + $0x40] sm:$0xff]
        %v216 = vld [vmem:[%s171 + $0x48] sm:$0xff]
        %v217 = vld [vmem:[%s171 + $0x50] sm:$0xff]
        %v218 = vld [vmem:[%s171 + $0x58] sm:$0xff]
        %v219 = vld [vmem:[%s171 + $0x60] sm:$0xff]
        %v220 = vld [vmem:[%s171 + $0x68] sm:$0xff]
        %v221 = vld [vmem:[%s171 + $0x70] sm:$0xff]
        %v222 = vld [vmem:[%s171 + $0x78] sm:$0xff]
        %v223 = vld [vmem:[%s203] sm:$0xff]
        %v224 = vld [vmem:[%s203 + $0x8] sm:$0xff]
        %v225 = vld [vmem:[%s203 + $0x10] sm:$0xff]
        %v226 = vld [vmem:[%s203 + $0x18] sm:$0xff]
        %v227 = vld [vmem:[%s203 + $0x20] sm:$0xff]
        %v228 = vld [vmem:[%s203 + $0x28] sm:$0xff]
        %v229 = vld [vmem:[%s203 + $0x30] sm:$0xff]
        %v230 = vld [vmem:[%s203 + $0x38] sm:$0xff]
        %232 = vset.pattern.permute.xlu0 0
        %233 = vperm.xlu0 %232, %v223
        %v234 = vpop.permute.xlu0 %233
        %237 = vset.pattern.permute.xlu0 0
        %238 = vperm.xlu0 %237, %v224
        %v239 = vpop.permute.xlu0 %238
        %242 = vset.pattern.permute.xlu0 0
        %243 = vperm.xlu0 %242, %v225
        %v244 = vpop.permute.xlu0 %243
        %247 = vset.pattern.permute.xlu0 0
        %248 = vperm.xlu0 %247, %v226
        %v249 = vpop.permute.xlu0 %248
        %252 = vset.pattern.permute.xlu0 0
        %253 = vperm.xlu0 %252, %v227
        %v254 = vpop.permute.xlu0 %253
        %257 = vset.pattern.permute.xlu0 0
        %258 = vperm.xlu0 %257, %v228
        %v259 = vpop.permute.xlu0 %258
        %262 = vset.pattern.permute.xlu0 0
        %263 = vperm.xlu0 %262, %v229
        %v264 = vpop.permute.xlu0 %263
        %267 = vset.pattern.permute.xlu0 0
        %268 = vperm.xlu0 %267, %v230
        %v269 = vpop.permute.xlu0 %268
        %v271 = vmul.f32 %v207, %v234
        %v272 = vmul.f32 %v208, %v234
        %v273 = vmul.f32 %v209, %v239
        %v274 = vmul.f32 %v210, %v239
        %v275 = vmul.f32 %v211, %v244
        %v276 = vmul.f32 %v212, %v244
        %v277 = vmul.f32 %v213, %v249
        %v278 = vmul.f32 %v214, %v249
        %v279 = vmul.f32 %v215, %v254
        %v280 = vmul.f32 %v216, %v254
        %v281 = vmul.f32 %v217, %v259
        %v282 = vmul.f32 %v218, %v259
        %v283 = vmul.f32 %v219, %v264
        %v284 = vmul.f32 %v220, %v264
        %v285 = vmul.f32 %v221, %v269
        %v286 = vmul.f32 %v222, %v269
        %287 = vst [vmem:[%s196] sm:$0xff] %v271
        %288 = vst [vmem:[%s196 + $0x8] sm:$0xff] %v272
        %289 = vst [vmem:[%s196 + $0x10] sm:$0xff] %v273
        %290 = vst [vmem:[%s196 + $0x18] sm:$0xff] %v274
        %291 = vst [vmem:[%s196 + $0x20] sm:$0xff] %v275
        %292 = vst [vmem:[%s196 + $0x28] sm:$0xff] %v276
        %293 = vst [vmem:[%s196 + $0x30] sm:$0xff] %v277
        %294 = vst [vmem:[%s196 + $0x38] sm:$0xff] %v278
        %295 = vst [vmem:[%s196 + $0x40] sm:$0xff] %v279
        %296 = vst [vmem:[%s196 + $0x48] sm:$0xff] %v280
        %297 = vst [vmem:[%s196 + $0x50] sm:$0xff] %v281
        %298 = vst [vmem:[%s196 + $0x58] sm:$0xff] %v282
        %299 = vst [vmem:[%s196 + $0x60] sm:$0xff] %v283
        %300 = vst [vmem:[%s196 + $0x68] sm:$0xff] %v284
        %301 = vst [vmem:[%s196 + $0x70] sm:$0xff] %v285
        %302 = vst [vmem:[%s196 + $0x78] sm:$0xff] %v286
        %s303 = sand.u32 %s95, 1
        %s304 = scalar_lea.sflag [#allocation4], %s303
        %s305 = sand.u32 %s95, 1
        %s306 = smul.addr %s305, 128
        %s307 = scalar_lea.vmem [#allocation5], %s306
        // Predicated region
        $region33: #{tpu_custom_call.1} parent=27 // pred_check
          %p308 = pneg %p105
        $region34: #{tpu_custom_call.1} parent=27 // pred_check_branch
          %310 = sbr.rel (%p308) target = $region36
        $region35: #{tpu_custom_call.1} parent=27 // pred_region
          %s311 = smul.u32 8, %s23
          %s312 = smul.u32 2, %s24
          %s314 = ssub.s32 2048, 2048
          %315 = vsyncadd %s304, %s314
          %s316 = smul.addr %s311, 2
          %s317 = sadd.s32 %s312, %s316
          %s318 = smul.addr %s317, 128
          %s319 = scalar_lea.hbm %s2, %s318
          %s320 = sshll.u32 %s307, 4
          %s321 = int_to_ptr.vmem [resolvable:$true] %s320
          %326 = dma.vmem_to_hbm [thread:$0]  %s321, 2048, %s319, %s304, 256, 256, 16
        $region36: #{tpu_custom_call.1} parent=27 // pred_fallthru
          _
      $region28: #{tpu_custom_call.1} parent=5 // pred_fallthru
        _
      %p327 = scmp.le.s32.totalorder 2, %s14
      // Predicated region
      $region37: #{tpu_custom_call.1} parent=5 // pred_check
        %p328 = pneg %p327
      $region38: #{tpu_custom_call.1} parent=5 // pred_check_branch
        %330 = sbr.rel (%p328) target = $region40
      $region39: #{tpu_custom_call.1} parent=5 // pred_region
        %s331 = ssub.s32 %s14, 2
        // Predicated region
        $region41: #{tpu_custom_call.1} parent=39 // pred_check
          %p332 = pneg %p111
        $region42: #{tpu_custom_call.1} parent=39 // pred_check_branch
          %334 = sbr.rel (%p332) target = $region44
        $region43: #{tpu_custom_call.1} parent=39 // pred_region
          %s335 = sand.u32 %s96, 1
          %s336 = scalar_lea.sflag [#allocation4], %s335
          %s337 = sand.u32 %s96, 1
          %s338 = smul.addr %s337, 128
          %s339 = scalar_lea.vmem [#allocation5], %s338
          %340 = dma.done %s336, 2048
        $region44: #{tpu_custom_call.1} parent=39 // pred_fallthru
          _
      $region40: #{tpu_custom_call.1} parent=5 // pred_fallthru
        _
    $region6: #{tpu_custom_call.1} parent=1 // loop_footer
      %s18 = sadd.s32 1, %s14
    $region7: #{tpu_custom_call.1} parent=1 // loop_footer_branch
      %13 = sbr.rel target = $region3
    $region8: #{tpu_custom_call.1} parent=1 // loop_exit
      _
    %341 = vsyncpa [#allocation3], 1
    %s342 = scalar_lea.sflag [#allocation3], 1
    %343 = vsyncpa %s342, 1
    %344 = vsyncpa [#allocation4], 1
    %s345 = scalar_lea.sflag [#allocation4], 1
    %346 = vsyncpa %s345, 1

</llo_original>
